<compile_context>
chip_gen: v5e
topology: v5e:2x2
jax: 0.10.0
libtpu: 0.0.40
codegen_flags: <defaults>
</compile_context>

<pallas_src>
import functools

import jax
import jax.numpy as jnp
from jax.experimental import pallas as pl
from jax.experimental.pallas import tpu as pltpu


def _round_up(n: int, m: int) -> int:
    return ((n + m - 1) // m) * m


def _mlp_kernel(x_ref, w1_ref, b1_ref, wh_ref, bh_ref, w5_ref, b5_ref, o_ref):
    """Fused forward: 5 f32 matmuls (MXU, f32 accum) + f32 bias/ReLU (VPU)."""
    h = jnp.dot(x_ref[...], w1_ref[...],
                preferred_element_type=jnp.float32) + b1_ref[...]
    h = jnp.maximum(h, 0.0)

    # fc2..fc4: static unroll over the stacked [3, H, H] weight ref.
    for k in range(wh_ref.shape[0]):
        h = jnp.dot(h, wh_ref[k], preferred_element_type=jnp.float32) + bh_ref[k]
        h = jnp.maximum(h, 0.0)

    out = jnp.dot(h, w5_ref[...], preferred_element_type=jnp.float32) + b5_ref[...]
    o_ref[...] = out.astype(o_ref.dtype)


@functools.partial(jax.jit, static_argnames=("batch_tile",))
def lstm_model_forward(x, params, *, batch_tile=2048):
    """x: [B, input_size] float32. params: w1..w5 ([in,out], f32), b1..b5 ([1,out], f32)."""
    B, in_dim = x.shape
    out_dim = params["w5"].shape[1]

    # Adaptive batch tile:
    #   - multiple of 8 (f32 sublane packing); default 2048 amortizes the
    #     ~0.35 us per-grid-step overhead and is a multiple of 256 (clean MXU
    #     M tiles on v6e/v7x, 128-aligned on v5e).
    #   - never larger than the (padded) batch so the BlockSpec stays legal for
    #     tiny test batches.
    bt = min(batch_tile, _round_up(B, 8))
    # Guarantee >= 2 grid steps whenever the batch is big enough so the
    # "parallel" axis puts work on both v7x TensorCores (no-op for v5e/v6e).
    if _round_up(B, 256) >= 512:
        bt = min(bt, _round_up(_round_up(B, 256) // 2, 256))
    B_pad = _round_up(B, bt)

    # Pad batch rows with zeros only when needed (sliced back off at the end).
    x_p = jnp.pad(x, ((0, B_pad - B), (0, 0))) if B_pad != B else x

    # Stack the three hidden->hidden layers into single refs.
    wh = jnp.stack([params["w2"], params["w3"], params["w4"]])   # [3, H, H]
    bh = jnp.stack([params["b2"], params["b3"], params["b4"]])   # [3, 1, H]

    def resident(arr):
        # Tiny weight/bias arrays: same full block every grid step (VMEM-resident).
        nd = arr.ndim
        return pl.BlockSpec(arr.shape, lambda i, _nd=nd: (0,) * _nd)

    grid = (B_pad // bt,)

    out = pl.pallas_call(
        _mlp_kernel,
        out_shape=jax.ShapeDtypeStruct((B_pad, out_dim), jnp.float32),
        grid=grid,
        in_specs=[
            pl.BlockSpec((bt, in_dim), lambda i: (i, 0)),   # x batch tile
            resident(params["w1"]), resident(params["b1"]),
            resident(wh), resident(bh),
            resident(params["w5"]), resident(params["b5"]),
        ],
        # Full-dim last block (out_dim): masked vst in-kernel, but no 128-lane
        # f32 padding and no wrapper slice pass -> minimal output HBM traffic.
        out_specs=pl.BlockSpec((bt, out_dim), lambda i: (i, 0)),
        compiler_params=pltpu.CompilerParams(
            dimension_semantics=("parallel",),
        ),
    )(x_p, params["w1"], params["b1"], wh, bh, params["w5"], params["b5"])

    return out[:B] if B_pad != B else out


def init_params(key, input_size, hidden_size, output_size):
    """Deterministic init mimicking nn.Linear's uniform(-1/sqrt(fan_in), 1/sqrt(fan_in)).

    Weights are stored transposed relative to PyTorch: [in_features, out_features].
    """
    dims = [
        (input_size, hidden_size),   # fc1
        (hidden_size, hidden_size),  # fc2
        (hidden_size, hidden_size),  # fc3
        (hidden_size, hidden_size),  # fc4
        (hidden_size, output_size),  # fc5
    ]
    params = {}
    keys = jax.random.split(key, 2 * len(dims))
    for idx, (fan_in, fan_out) in enumerate(dims):
        bound = 1.0 / jnp.sqrt(jnp.float32(fan_in))
        w_ = jax.random.uniform(keys[2 * idx], (fan_in, fan_out),
                                minval=-bound, maxval=bound, dtype=jnp.float32)
        b_ = jax.random.uniform(keys[2 * idx + 1], (1, fan_out),
                                minval=-bound, maxval=bound, dtype=jnp.float32)
        params[f"w{idx + 1}"] = w_
        params[f"b{idx + 1}"] = b_
    return params


def reference_forward(x, params):
    """Pure f32 reference (matches the PyTorch module's forward)."""
    h = x
    for layer in range(1, 5):
        h = jnp.maximum(h @ params[f"w{layer}"] + params[f"b{layer}"], 0.0)
    return h @ params["w5"] + params["b5"]


if __name__ == "__main__":
    key = jax.random.PRNGKey(0)
    k_params, k_x, k_x2 = jax.random.split(key, 3)

    batch = 8
    input_size = 32
    hidden_size = 32
    num_layers = 2   # unused by forward (module name says LSTM but forward is an MLP)
    output_size = 16

    params = init_params(k_params, input_size, hidden_size, output_size)

    # Small-batch check (single grid step, full-dim blocks).
    x = jax.random.normal(k_x, (batch, input_size), dtype=jnp.float32)
    out = jax.block_until_ready(lstm_model_forward(x, params))
    ref = reference_forward(x, params)
    assert out.shape == (batch, output_size)
    assert jnp.allclose(out, ref, atol=2e-2, rtol=2e-2), "mismatch vs reference (small batch)"

    # Larger-batch check: exercises the 1024-row tile and the >=2-step grid.
    x2 = jax.random.normal(k_x2, (2048, input_size), dtype=jnp.float32)
    out2 = jax.block_until_ready(lstm_model_forward(x2, params))
    ref2 = reference_forward(x2, params)
    assert out2.shape == (2048, output_size)
    assert jnp.allclose(out2, ref2, atol=2e-2, rtol=2e-2), "mismatch vs reference (large batch)"

    print("KERNEL_OK")
</pallas_src>

<mosaic_0001>
module attributes {stable_mosaic.version = 11 : i64} {
  func.func @_mlp_kernel(%arg0: i32, %arg1: memref<8x32xf32, #tpu.memory_space<vmem>>, %arg2: memref<32x32xf32, #tpu.memory_space<vmem>>, %arg3: memref<1x32xf32, #tpu.memory_space<vmem>>, %arg4: memref<3x32x32xf32, #tpu.memory_space<vmem>>, %arg5: memref<3x1x32xf32, #tpu.memory_space<vmem>>, %arg6: memref<32x16xf32, #tpu.memory_space<vmem>>, %arg7: memref<1x16xf32, #tpu.memory_space<vmem>>, %arg8: memref<8x16xf32, #tpu.memory_space<vmem>>) attributes {dimension_semantics = [#tpu.dimension_semantics<parallel>], iteration_bounds = array<i64: 1>, scalar_prefetch = 0 : i64, scratch_operands = 0 : i64, tpu.core_type = #tpu.core_type<tc>, window_params = [{transform_indices = @transform_0, window_bounds = array<i64: 8, 32>}, {pipeline_mode = #tpu.pipeline_mode<synchronous>, transform_indices = @transform_1, window_bounds = array<i64: 32, 32>}, {pipeline_mode = #tpu.pipeline_mode<synchronous>, transform_indices = @transform_2, window_bounds = array<i64: 1, 32>}, {pipeline_mode = #tpu.pipeline_mode<synchronous>, transform_indices = @transform_3, window_bounds = array<i64: 3, 32, 32>}, {pipeline_mode = #tpu.pipeline_mode<synchronous>, transform_indices = @transform_4, window_bounds = array<i64: 3, 1, 32>}, {pipeline_mode = #tpu.pipeline_mode<synchronous>, transform_indices = @transform_5, window_bounds = array<i64: 32, 16>}, {pipeline_mode = #tpu.pipeline_mode<synchronous>, transform_indices = @transform_6, window_bounds = array<i64: 1, 16>}, {transform_indices = @transform_7, window_bounds = array<i64: 8, 16>}]} {
    %c0 = arith.constant 0 : index
    %c0_0 = arith.constant 0 : index
    %0 = vector.load %arg1[%c0, %c0_0] : memref<8x32xf32, #tpu.memory_space<vmem>>, vector<8x32xf32>
    %c0_1 = arith.constant 0 : index
    %c0_2 = arith.constant 0 : index
    %1 = vector.load %arg2[%c0_1, %c0_2] : memref<32x32xf32, #tpu.memory_space<vmem>>, vector<32x32xf32>
    %cst = arith.constant dense<0.000000e+00> : vector<8x32xf32>
    %2 = tpu.matmul %0, %1, %cst {dimension_numbers = #tpu.dot_dimension_numbers<[1], [0], [0], [1], [0, 0, 1, 1], [], []>} : vector<8x32xf32>, vector<32x32xf32>, vector<8x32xf32> -> vector<8x32xf32>
    %c0_3 = arith.constant 0 : index
    %c0_4 = arith.constant 0 : index
    %3 = vector.load %arg3[%c0_3, %c0_4] : memref<1x32xf32, #tpu.memory_space<vmem>>, vector<1x32xf32>
    %4 = vector.broadcast %3 : vector<1x32xf32> to vector<8x32xf32>
    %5 = arith.addf %2, %4 : vector<8x32xf32>
    %cst_5 = arith.constant 0.000000e+00 : f32
    %6 = vector.broadcast %cst_5 : f32 to vector<8x32xf32>
    %7 = arith.maximumf %5, %6 : vector<8x32xf32>
    %c0_6 = arith.constant 0 : index
    %c0_7 = arith.constant 0 : index
    %c0_8 = arith.constant 0 : index
    %8 = vector.load %arg4[%c0_6, %c0_7, %c0_8] : memref<3x32x32xf32, #tpu.memory_space<vmem>>, vector<1x32x32xf32>
    %9 = vector.shape_cast %8 : vector<1x32x32xf32> to vector<32x32xf32>
    %cst_9 = arith.constant dense<0.000000e+00> : vector<8x32xf32>
    %10 = tpu.matmul %7, %9, %cst_9 {dimension_numbers = #tpu.dot_dimension_numbers<[1], [0], [0], [1], [0, 0, 1, 1], [], []>} : vector<8x32xf32>, vector<32x32xf32>, vector<8x32xf32> -> vector<8x32xf32>
    %c0_10 = arith.constant 0 : index
    %c0_11 = arith.constant 0 : index
    %c0_12 = arith.constant 0 : index
    %11 = vector.load %arg5[%c0_10, %c0_11, %c0_12] : memref<3x1x32xf32, #tpu.memory_space<vmem>>, vector<1x1x32xf32>
    %12 = vector.shape_cast %11 : vector<1x1x32xf32> to vector<1x32xf32>
    %13 = vector.broadcast %12 : vector<1x32xf32> to vector<8x32xf32>
    %14 = arith.addf %10, %13 : vector<8x32xf32>
    %cst_13 = arith.constant 0.000000e+00 : f32
    %15 = vector.broadcast %cst_13 : f32 to vector<8x32xf32>
    %16 = arith.maximumf %14, %15 : vector<8x32xf32>
    %c1 = arith.constant 1 : index
    %c0_14 = arith.constant 0 : index
    %c0_15 = arith.constant 0 : index
    %17 = vector.load %arg4[%c1, %c0_14, %c0_15] : memref<3x32x32xf32, #tpu.memory_space<vmem>>, vector<1x32x32xf32>
    %18 = vector.shape_cast %17 : vector<1x32x32xf32> to vector<32x32xf32>
    %cst_16 = arith.constant dense<0.000000e+00> : vector<8x32xf32>
    %19 = tpu.matmul %16, %18, %cst_16 {dimension_numbers = #tpu.dot_dimension_numbers<[1], [0], [0], [1], [0, 0, 1, 1], [], []>} : vector<8x32xf32>, vector<32x32xf32>, vector<8x32xf32> -> vector<8x32xf32>
    %c1_17 = arith.constant 1 : index
    %c0_18 = arith.constant 0 : index
    %c0_19 = arith.constant 0 : index
    %20 = vector.load %arg5[%c1_17, %c0_18, %c0_19] : memref<3x1x32xf32, #tpu.memory_space<vmem>>, vector<1x1x32xf32>
    %21 = vector.shape_cast %20 : vector<1x1x32xf32> to vector<1x32xf32>
    %22 = vector.broadcast %21 : vector<1x32xf32> to vector<8x32xf32>
    %23 = arith.addf %19, %22 : vector<8x32xf32>
    %cst_20 = arith.constant 0.000000e+00 : f32
    %24 = vector.broadcast %cst_20 : f32 to vector<8x32xf32>
    %25 = arith.maximumf %23, %24 : vector<8x32xf32>
    %c2 = arith.constant 2 : index
    %c0_21 = arith.constant 0 : index
    %c0_22 = arith.constant 0 : index
    %26 = vector.load %arg4[%c2, %c0_21, %c0_22] : memref<3x32x32xf32, #tpu.memory_space<vmem>>, vector<1x32x32xf32>
    %27 = vector.shape_cast %26 : vector<1x32x32xf32> to vector<32x32xf32>
    %cst_23 = arith.constant dense<0.000000e+00> : vector<8x32xf32>
    %28 = tpu.matmul %25, %27, %cst_23 {dimension_numbers = #tpu.dot_dimension_numbers<[1], [0], [0], [1], [0, 0, 1, 1], [], []>} : vector<8x32xf32>, vector<32x32xf32>, vector<8x32xf32> -> vector<8x32xf32>
    %c2_24 = arith.constant 2 : index
    %c0_25 = arith.constant 0 : index
    %c0_26 = arith.constant 0 : index
    %29 = vector.load %arg5[%c2_24, %c0_25, %c0_26] : memref<3x1x32xf32, #tpu.memory_space<vmem>>, vector<1x1x32xf32>
    %30 = vector.shape_cast %29 : vector<1x1x32xf32> to vector<1x32xf32>
    %31 = vector.broadcast %30 : vector<1x32xf32> to vector<8x32xf32>
    %32 = arith.addf %28, %31 : vector<8x32xf32>
    %cst_27 = arith.constant 0.000000e+00 : f32
    %33 = vector.broadcast %cst_27 : f32 to vector<8x32xf32>
    %34 = arith.maximumf %32, %33 : vector<8x32xf32>
    %c0_28 = arith.constant 0 : index
    %c0_29 = arith.constant 0 : index
    %35 = vector.load %arg6[%c0_28, %c0_29] : memref<32x16xf32, #tpu.memory_space<vmem>>, vector<32x16xf32>
    %cst_30 = arith.constant dense<0.000000e+00> : vector<8x16xf32>
    %36 = tpu.matmul %34, %35, %cst_30 {dimension_numbers = #tpu.dot_dimension_numbers<[1], [0], [0], [1], [0, 0, 1, 1], [], []>} : vector<8x32xf32>, vector<32x16xf32>, vector<8x16xf32> -> vector<8x16xf32>
    %c0_31 = arith.constant 0 : index
    %c0_32 = arith.constant 0 : index
    %37 = vector.load %arg7[%c0_31, %c0_32] : memref<1x16xf32, #tpu.memory_space<vmem>>, vector<1x16xf32>
    %38 = vector.broadcast %37 : vector<1x16xf32> to vector<8x16xf32>
    %39 = arith.addf %36, %38 : vector<8x16xf32>
    %c0_33 = arith.constant 0 : index
    %c0_34 = arith.constant 0 : index
    %40 = vector.load %arg8[%c0_33, %c0_34] : memref<8x16xf32, #tpu.memory_space<vmem>>, vector<8x16xf32>
    tpu.vector_store %arg8[%c0_33, %c0_34], %39 {strides = array<i32>} : memref<8x16xf32, #tpu.memory_space<vmem>>, vector<8x16xf32>,
    return
  }
  func.func @transform_0(%arg0: i32) -> (i32, i32) {
    %c0_i32 = arith.constant 0 : i32
    %c0_i32_0 = arith.constant 0 : i32
    return %arg0, %c0_i32 : i32, i32
  }
  func.func @transform_1(%arg0: i32) -> (i32, i32) {
    %c0_i32 = arith.constant 0 : i32
    %c0_i32_0 = arith.constant 0 : i32
    %c0_i32_1 = arith.constant 0 : i32
    return %c0_i32, %c0_i32_0 : i32, i32
  }
  func.func @transform_2(%arg0: i32) -> (i32, i32) {
    %c0_i32 = arith.constant 0 : i32
    %c0_i32_0 = arith.constant 0 : i32
    %c0_i32_1 = arith.constant 0 : i32
    return %c0_i32, %c0_i32_0 : i32, i32
  }
  func.func @transform_3(%arg0: i32) -> (i32, i32, i32) {
    %c0_i32 = arith.constant 0 : i32
    %c0_i32_0 = arith.constant 0 : i32
    %c0_i32_1 = arith.constant 0 : i32
    %c0_i32_2 = arith.constant 0 : i32
    return %c0_i32, %c0_i32_0, %c0_i32_1 : i32, i32, i32
  }
  func.func @transform_4(%arg0: i32) -> (i32, i32, i32) {
    %c0_i32 = arith.constant 0 : i32
    %c0_i32_0 = arith.constant 0 : i32
    %c0_i32_1 = arith.constant 0 : i32
    %c0_i32_2 = arith.constant 0 : i32
    return %c0_i32, %c0_i32_0, %c0_i32_1 : i32, i32, i32
  }
  func.func @transform_5(%arg0: i32) -> (i32, i32) {
    %c0_i32 = arith.constant 0 : i32
    %c0_i32_0 = arith.constant 0 : i32
    %c0_i32_1 = arith.constant 0 : i32
    return %c0_i32, %c0_i32_0 : i32, i32
  }
  func.func @transform_6(%arg0: i32) -> (i32, i32) {
    %c0_i32 = arith.constant 0 : i32
    %c0_i32_0 = arith.constant 0 : i32
    %c0_i32_1 = arith.constant 0 : i32
    return %c0_i32, %c0_i32_0 : i32, i32
  }
  func.func @transform_7(%arg0: i32) -> (i32, i32) {
    %c0_i32 = arith.constant 0 : i32
    %c0_i32_0 = arith.constant 0 : i32
    return %arg0, %c0_i32 : i32, i32
  }
}

</mosaic_0001>

<llo_original>
// kernel: lstm_model_forward.1
$region0: #{lstm_model_forward.1}
  #allocation0 [shape = 'u32[]', space=smem, size = 0x4, offset = 0x4, fixed_abs, tag = 'smem constant byte address 0x4 - core index']
  #allocation1 [shape = 'u32[72,128]{1,0:T(1,128)}', space=vmem, size = 0x9000, scoped, tag = 'internal scratch']
  %s0 = inlined_call_operand.vmem [shape: f32[8,32], index: 0, kind: input, shape index: {}]
  %s1 = inlined_call_operand.vmem [shape: f32[32,32], index: 1, kind: input, shape index: {}]
  %s2 = inlined_call_operand.vmem [shape: f32[1,32], index: 2, kind: input, shape index: {}]
  %s3 = inlined_call_operand.vmem [shape: f32[3,32,32], index: 3, kind: input, shape index: {}]
  %s4 = inlined_call_operand.vmem [shape: f32[3,1,32], index: 4, kind: input, shape index: {}]
  %s5 = inlined_call_operand.vmem [shape: f32[32,16], index: 5, kind: input, shape index: {}]
  %s6 = inlined_call_operand.vmem [shape: f32[1,16], index: 6, kind: input, shape index: {}]
  %s7 = inlined_call_operand.hbm [shape: f32[8,16], index: 7, kind: output, shape index: {}]
  %s8 = sld [smem:[#allocation0]]
  $region38: #{lstm_model_forward.1} parent=0
    _
  %s10 = ssub.s32 1, %s8
  %s11 = scalar_select 0, %s10, %s8
  $region1: #{lstm_model_forward.1} parent=0
    #allocation2 [shape = 'u8[4096]{0}', space=vmem, size = 0x1000, scoped, tag = 'output window, operand 0, single buffered']
    #allocation3 [shape = 's32[1]{0}', space=sflag, size = 0x4, scoped, tag = 'scoped memory for lstm_model_forward.1']
    %12 = vsyncpa [#allocation3], 0
    // Predicated region
    $region2: #{lstm_model_forward.1} parent=1 // pred_check
      _
    $region3: #{lstm_model_forward.1} parent=1 // pred_check_branch
      %14 = sbr.rel (0) target = $region5
    $region4: #{lstm_model_forward.1} parent=1 // pred_region
      _
    $region5: #{lstm_model_forward.1} parent=1 // pred_fallthru
      _
    // Predicated region
    $region6: #{lstm_model_forward.1} parent=1 // pred_check
      _
    $region7: #{lstm_model_forward.1} parent=1 // pred_check_branch
      %16 = sbr.rel (0) target = $region9
    $region8: #{lstm_model_forward.1} parent=1 // pred_region
      _
    $region9: #{lstm_model_forward.1} parent=1 // pred_fallthru
      _
    // Predicated region
    $region10: #{lstm_model_forward.1} parent=1 // pred_check
      _
    $region11: #{lstm_model_forward.1} parent=1 // pred_check_branch
      %18 = sbr.rel (0) target = $region13
    $region12: #{lstm_model_forward.1} parent=1 // pred_region
      _
    $region13: #{lstm_model_forward.1} parent=1 // pred_fallthru
      _
    // Predicated region
    $region14: #{lstm_model_forward.1} parent=1 // pred_check
      _
    $region15: #{lstm_model_forward.1} parent=1 // pred_check_branch
      %20 = sbr.rel (0) target = $region17
    $region16: #{lstm_model_forward.1} parent=1 // pred_region
      _
    $region17: #{lstm_model_forward.1} parent=1 // pred_fallthru
      _
    // Predicated region
    $region18: #{lstm_model_forward.1} parent=1 // pred_check
      _
    $region19: #{lstm_model_forward.1} parent=1 // pred_check_branch
      %22 = sbr.rel (0) target = $region21
    $region20: #{lstm_model_forward.1} parent=1 // pred_region
      _
    $region21: #{lstm_model_forward.1} parent=1 // pred_fallthru
      _
    // Predicated region
    $region22: #{lstm_model_forward.1} parent=1 // pred_check
      _
    $region23: #{lstm_model_forward.1} parent=1 // pred_check_branch
      %24 = sbr.rel (0) target = $region25
    $region24: #{lstm_model_forward.1} parent=1 // pred_region
      _
    $region25: #{lstm_model_forward.1} parent=1 // pred_fallthru
      _
    // Predicated region
    $region26: #{lstm_model_forward.1} parent=1 // pred_check
      _
    $region27: #{lstm_model_forward.1} parent=1 // pred_check_branch
      %26 = sbr.rel (0) target = $region29
    $region28: #{lstm_model_forward.1} parent=1 // pred_region
      _
    $region29: #{lstm_model_forward.1} parent=1 // pred_fallthru
      _
    %v27 = vld [vmem:[%s0] sm:$0xff]
    %v28 = vld [vmem:[%s1] sm:$0xff]
    %v29 = vld [vmem:[%s1 + $0x8] sm:$0xff]
    %v30 = vld [vmem:[%s1 + $0x10] sm:$0xff]
    %v31 = vld [vmem:[%s1 + $0x18] sm:$0xff]
    %v32 = vld [vmem:[%s2] sm:$0x1]
    %v34 = vperm.slane %v32, 0
    %vm36 = vcmask 261120
    %v38 = vsel %vm36, %v27, 0
    %40 = vmatpush.msra.mxu0 0.0
    %41 = vmatpush.msra.mxu0 0.0
    %42 = vmatpush.msra.mxu0 0.0
    %43 = vmatpush.msra.mxu0 0.0
    %44 = vmatpush.msra.mxu0 0.0
    %45 = vmatpush.msra.mxu0 0.0
    %46 = vmatpush.msra.mxu0 0.0
    %47 = vmatpush.msra.mxu0 0.0
    %48 = vmatpush.msra.mxu0 0.0
    %49 = vmatpush.msra.mxu0 0.0
    %50 = vmatpush.msra.mxu0 0.0
    %51 = vmatpush.msra.mxu0 0.0
    %52 = vmatpush.msra.mxu0 %v31
    %53 = vmatpush.msra.mxu0 %v30
    %54 = vmatpush.msra.mxu0 %v29
    %55 = vmatpush.msra.mxu0 %v28
    %56 = vmatmul.f32.gmra.mxu0 %v38
    %v57 = vpop.f32.mrf.mxu0
    %v58 = vadd.f32 %v34, %v57
    %59 = vdwg.mxu0
    %v60 = vmax.f32 %v58, 0.0
    %v61 = vld [vmem:[%s3] sm:$0xff]
    %v62 = vld [vmem:[%s3 + $0x8] sm:$0xff]
    %v63 = vld [vmem:[%s3 + $0x10] sm:$0xff]
    %v64 = vld [vmem:[%s3 + $0x18] sm:$0xff]
    %v65 = vld [vmem:[%s4] sm:$0x1]
    %v67 = vperm.slane %v65, 0
    %v70 = vsel %vm36, %v60, 0
    %72 = vmatpush.msra.mxu0 0.0
    %73 = vmatpush.msra.mxu0 0.0
    %74 = vmatpush.msra.mxu0 0.0
    %75 = vmatpush.msra.mxu0 0.0
    %76 = vmatpush.msra.mxu0 0.0
    %77 = vmatpush.msra.mxu0 0.0
    %78 = vmatpush.msra.mxu0 0.0
    %79 = vmatpush.msra.mxu0 0.0
    %80 = vmatpush.msra.mxu0 0.0
    %81 = vmatpush.msra.mxu0 0.0
    %82 = vmatpush.msra.mxu0 0.0
    %83 = vmatpush.msra.mxu0 0.0
    %84 = vmatpush.msra.mxu0 %v64
    %85 = vmatpush.msra.mxu0 %v63
    %86 = vmatpush.msra.mxu0 %v62
    %87 = vmatpush.msra.mxu0 %v61
    %88 = vmatmul.f32.gmra.mxu0 %v70
    %v89 = vpop.f32.mrf.mxu0
    %v90 = vadd.f32 %v67, %v89
    %91 = vdwg.mxu0
    %v92 = vmax.f32 %v90, 0.0
    %s93 = scalar_lea.vmem %s3, 32
    %v94 = vld [vmem:[%s93] sm:$0xff]
    %v95 = vld [vmem:[%s93 + $0x8] sm:$0xff]
    %v96 = vld [vmem:[%s93 + $0x10] sm:$0xff]
    %v97 = vld [vmem:[%s93 + $0x18] sm:$0xff]
    %s98 = scalar_lea.vmem %s4, 1
    %v99 = vld [vmem:[%s98] sm:$0x1]
    %v101 = vperm.slane %v99, 0
    %v104 = vsel %vm36, %v92, 0
    %106 = vmatpush.msra.mxu0 0.0
    %107 = vmatpush.msra.mxu0 0.0
    %108 = vmatpush.msra.mxu0 0.0
    %109 = vmatpush.msra.mxu0 0.0
    %110 = vmatpush.msra.mxu0 0.0
    %111 = vmatpush.msra.mxu0 0.0
    %112 = vmatpush.msra.mxu0 0.0
    %113 = vmatpush.msra.mxu0 0.0
    %114 = vmatpush.msra.mxu0 0.0
    %115 = vmatpush.msra.mxu0 0.0
    %116 = vmatpush.msra.mxu0 0.0
    %117 = vmatpush.msra.mxu0 0.0
    %118 = vmatpush.msra.mxu0 %v97
    %119 = vmatpush.msra.mxu0 %v96
    %120 = vmatpush.msra.mxu0 %v95
    %121 = vmatpush.msra.mxu0 %v94
    %122 = vmatmul.f32.gmra.mxu0 %v104
    %v123 = vpop.f32.mrf.mxu0
    %v124 = vadd.f32 %v101, %v123
    %125 = vdwg.mxu0
    %v126 = vmax.f32 %v124, 0.0
    %s127 = scalar_lea.vmem %s3, 64
    %v128 = vld [vmem:[%s127] sm:$0xff]
    %v129 = vld [vmem:[%s127 + $0x8] sm:$0xff]
    %v130 = vld [vmem:[%s127 + $0x10] sm:$0xff]
    %v131 = vld [vmem:[%s127 + $0x18] sm:$0xff]
    %s132 = scalar_lea.vmem %s4, 2
    %v133 = vld [vmem:[%s132] sm:$0x1]
    %v135 = vperm.slane %v133, 0
    %v138 = vsel %vm36, %v126, 0
    %140 = vmatpush.msra.mxu0 0.0
    %141 = vmatpush.msra.mxu0 0.0
    %142 = vmatpush.msra.mxu0 0.0
    %143 = vmatpush.msra.mxu0 0.0
    %144 = vmatpush.msra.mxu0 0.0
    %145 = vmatpush.msra.mxu0 0.0
    %146 = vmatpush.msra.mxu0 0.0
    %147 = vmatpush.msra.mxu0 0.0
    %148 = vmatpush.msra.mxu0 0.0
    %149 = vmatpush.msra.mxu0 0.0
    %150 = vmatpush.msra.mxu0 0.0
    %151 = vmatpush.msra.mxu0 0.0
    %152 = vmatpush.msra.mxu0 %v131
    %153 = vmatpush.msra.mxu0 %v130
    %154 = vmatpush.msra.mxu0 %v129
    %155 = vmatpush.msra.mxu0 %v128
    %156 = vmatmul.f32.gmra.mxu0 %v138
    %v157 = vpop.f32.mrf.mxu0
    %v158 = vadd.f32 %v135, %v157
    %159 = vdwg.mxu0
    %v160 = vmax.f32 %v158, 0.0
    %v161 = vld [vmem:[%s5] sm:$0xff]
    %v162 = vld [vmem:[%s5 + $0x8] sm:$0xff]
    %v163 = vld [vmem:[%s5 + $0x10] sm:$0xff]
    %v164 = vld [vmem:[%s5 + $0x18] sm:$0xff]
    %v165 = vld [vmem:[%s6] sm:$0x1]
    %v167 = vperm.slane %v165, 0
    %v170 = vsel %vm36, %v160, 0
    %172 = vmatpush.msra.mxu0 0.0
    %173 = vmatpush.msra.mxu0 0.0
    %174 = vmatpush.msra.mxu0 0.0
    %175 = vmatpush.msra.mxu0 0.0
    %176 = vmatpush.msra.mxu0 0.0
    %177 = vmatpush.msra.mxu0 0.0
    %178 = vmatpush.msra.mxu0 0.0
    %179 = vmatpush.msra.mxu0 0.0
    %180 = vmatpush.msra.mxu0 0.0
    %181 = vmatpush.msra.mxu0 0.0
    %182 = vmatpush.msra.mxu0 0.0
    %183 = vmatpush.msra.mxu0 0.0
    %184 = vmatpush.msra.mxu0 %v164
    %185 = vmatpush.msra.mxu0 %v163
    %186 = vmatpush.msra.mxu0 %v162
    %187 = vmatpush.msra.mxu0 %v161
    %188 = vmatmul.f32.gmra.mxu0 %v170
    %v189 = vpop.f32.mrf.mxu0
    %v190 = vadd.f32 %v167, %v189
    %191 = vdwg.mxu0
    %vm192 = vcmask 130048
    %193 = vst.msk [vmem:[#allocation2] sm:$0xff] %vm192, %v190
    // Predicated region
    $region30: #{lstm_model_forward.1} parent=1 // pred_check
      _
    $region31: #{lstm_model_forward.1} parent=1 // pred_check_branch
      %195 = sbr.rel (0) target = $region33
    $region32: #{lstm_model_forward.1} parent=1 // pred_region
      %197 = vsyncadd [#allocation3], 0
      %s199 = sshll.u32 [#allocation2], 4
      %s200 = int_to_ptr.vmem [resolvable:$true] %s199
      %s201 = sshll.u32 %s7, 4
      %s202 = int_to_ptr.hbm [resolvable:$true] %s201
      %204 = dma.vmem_to_hbm [thread:$0]  %s200, 128, %s202, [#allocation3]
    $region33: #{lstm_model_forward.1} parent=1 // pred_fallthru
      _
    // Predicated region
    $region34: #{lstm_model_forward.1} parent=1 // pred_check
      _
    $region35: #{lstm_model_forward.1} parent=1 // pred_check_branch
      %206 = sbr.rel (0) target = $region37
    $region36: #{lstm_model_forward.1} parent=1 // pred_region
      %208 = dma.done [#allocation3], 128
    $region37: #{lstm_model_forward.1} parent=1 // pred_fallthru
      _
    %209 = vsyncpa [#allocation3], 1

</llo_original>
